<compile_context>
chip_gen: v6e
topology: v6e:2x2x1
jax: 0.10.0
libtpu: 0.0.40
codegen_flags: <defaults>
</compile_context>

<pallas_src>
import jax
import jax.numpy as jnp
from jax.experimental import pallas as pl
from jax.experimental.pallas import tpu as pltpu


def rnn_recurrence_kernel(xproj_ref, whh_ref, wfc_ref, bfc_ref, out_ref):
    """Serial recurrence + final FC.

    xproj_ref: (T, B, H)  precomputed x_t @ W_ih + (b_ih + b_hh)
    whh_ref:   (H, H)     W_hh^T
    wfc_ref:   (H, C)     W_fc^T
    bfc_ref:   (1, C)
    out_ref:   (B, C)
    """
    T = xproj_ref.shape[0]
    whh = whh_ref[...]

    # t = 0: h_prev == 0, so h @ W_hh vanishes.
    h = jnp.tanh(xproj_ref[0])

    # Static unroll over the (small, trace-time-known) sequence length.
    for t in range(1, T):
        h = jnp.tanh(xproj_ref[t]
                     + jnp.dot(h, whh, preferred_element_type=jnp.float32))

    out_ref[...] = (jnp.dot(h, wfc_ref[...], preferred_element_type=jnp.float32)
                    + bfc_ref[...])


def rnn_forward(x, params):
    """x: (B, input_dim, T) float32 -> (B, num_classes) float32."""
    wih, whh, bih, bhh, wfc, bfc = params
    B, D, T = x.shape
    H = wih.shape[1]
    C = wfc.shape[1]

    # Hoist the input projection out of the serial chain: one batched matmul
    # over all timesteps, with both RNN biases folded in.
    # (B, D, T) -> (T, B, H)
    bias = bih + bhh                                   # (1, H)
    xproj = jnp.einsum("bdt,dh->tbh", x, wih,
                       preferred_element_type=jnp.float32) + bias

    grid_spec = pltpu.PrefetchScalarGridSpec(
        num_scalar_prefetch=0,
        grid=(1,),                                     # single invocation
        in_specs=[
            pl.BlockSpec((T, B, H), lambda i: (0, 0, 0)),  # x_proj (resident)
            pl.BlockSpec((H, H), lambda i: (0, 0)),        # W_hh^T
            pl.BlockSpec((H, C), lambda i: (0, 0)),        # W_fc^T
            pl.BlockSpec((1, C), lambda i: (0, 0)),        # b_fc
        ],
        out_specs=pl.BlockSpec((B, C), lambda i: (0, 0)),
    )

    # TODO(synk): if batch grows, add a leading "parallel" batch grid axis so
    # v7x's second TensorCore is used; at B=2 it does not pay.
    return pl.pallas_call(
        rnn_recurrence_kernel,
        out_shape=jax.ShapeDtypeStruct((B, C), jnp.float32),
        grid_spec=grid_spec,
        compiler_params=pltpu.CompilerParams(
            dimension_semantics=("arbitrary",)),
    )(xproj, whh, wfc, bfc)


def rnn_reference(x, params):
    """Pure-JAX reference of the PyTorch forward (for correctness check)."""
    wih, whh, bih, bhh, wfc, bfc = params
    x_btd = jnp.transpose(x, (0, 2, 1))            # (B, T, D)
    B, T, D = x_btd.shape
    H = wih.shape[1]
    h = jnp.zeros((B, H), jnp.float32)

    def step(h, x_t):
        h_new = jnp.tanh(x_t @ wih + h @ whh + bih[0] + bhh[0])
        return h_new, None

    h_last, _ = jax.lax.scan(step, h, jnp.transpose(x_btd, (1, 0, 2)))
    return h_last @ wfc + bfc[0]


def make_params(key, input_dim, hidden_dim, num_classes):
    # Deterministic init, matches PyTorch nn.RNN/Linear U(-1/sqrt(fan), 1/sqrt(fan)).
    ks = jax.random.split(key, 6)
    s_rnn = 1.0 / jnp.sqrt(hidden_dim)
    s_fc = 1.0 / jnp.sqrt(hidden_dim)
    wih = jax.random.uniform(ks[0], (input_dim, hidden_dim), jnp.float32, -s_rnn, s_rnn)
    whh = jax.random.uniform(ks[1], (hidden_dim, hidden_dim), jnp.float32, -s_rnn, s_rnn)
    bih = jax.random.uniform(ks[2], (1, hidden_dim), jnp.float32, -s_rnn, s_rnn)
    bhh = jax.random.uniform(ks[3], (1, hidden_dim), jnp.float32, -s_rnn, s_rnn)
    wfc = jax.random.uniform(ks[4], (hidden_dim, num_classes), jnp.float32, -s_fc, s_fc)
    bfc = jax.random.uniform(ks[5], (1, num_classes), jnp.float32, -s_fc, s_fc)
    return (wih, whh, bih, bhh, wfc, bfc)


if __name__ == "__main__":
    # Small shapes consistent with the module's forward:
    # x: (batch, input_dim, seq) -> transpose -> (batch, seq, input_dim)
    B, INPUT_DIM, T = 2, 4, 16
    HIDDEN_DIM, NUM_CLASSES = 32, 4

    key = jax.random.PRNGKey(0)
    kx, kp = jax.random.split(key)
    x = jax.random.normal(kx, (B, INPUT_DIM, T), jnp.float32)
    params = make_params(kp, INPUT_DIM, HIDDEN_DIM, NUM_CLASSES)

    fwd = jax.jit(rnn_forward)
    out = fwd(x, params)
    out = jax.block_until_ready(out)

    ref = rnn_reference(x, params)
    assert out.shape == (B, NUM_CLASSES)
    assert jnp.allclose(out, ref, atol=1e-5, rtol=1e-5), "mismatch vs reference"

    print("KERNEL_OK")
</pallas_src>

<mosaic_0001>
module attributes {stable_mosaic.version = 11 : i64} {
  func.func @rnn_recurrence_kernel(%arg0: i32, %arg1: memref<16x2x32xf32, #tpu.memory_space<vmem>>, %arg2: memref<32x32xf32, #tpu.memory_space<vmem>>, %arg3: memref<32x4xf32, #tpu.memory_space<vmem>>, %arg4: memref<1x4xf32, #tpu.memory_space<vmem>>, %arg5: memref<2x4xf32, #tpu.memory_space<vmem>>) attributes {dimension_semantics = [#tpu.dimension_semantics<arbitrary>], iteration_bounds = array<i64: 1>, scalar_prefetch = 0 : i64, scratch_operands = 0 : i64, tpu.core_type = #tpu.core_type<tc>, window_params = [{pipeline_mode = #tpu.pipeline_mode<synchronous>, transform_indices = @transform_0, window_bounds = array<i64: 16, 2, 32>}, {pipeline_mode = #tpu.pipeline_mode<synchronous>, transform_indices = @transform_1, window_bounds = array<i64: 32, 32>}, {pipeline_mode = #tpu.pipeline_mode<synchronous>, transform_indices = @transform_2, window_bounds = array<i64: 32, 4>}, {pipeline_mode = #tpu.pipeline_mode<synchronous>, transform_indices = @transform_3, window_bounds = array<i64: 1, 4>}, {pipeline_mode = #tpu.pipeline_mode<synchronous>, transform_indices = @transform_4, window_bounds = array<i64: 2, 4>}]} {
    %c0 = arith.constant 0 : index
    %c0_0 = arith.constant 0 : index
    %0 = vector.load %arg2[%c0, %c0_0] : memref<32x32xf32, #tpu.memory_space<vmem>>, vector<32x32xf32>
    %c0_1 = arith.constant 0 : index
    %c0_2 = arith.constant 0 : index
    %c0_3 = arith.constant 0 : index
    %1 = vector.load %arg1[%c0_1, %c0_2, %c0_3] : memref<16x2x32xf32, #tpu.memory_space<vmem>>, vector<1x2x32xf32>
    %2 = vector.shape_cast %1 : vector<1x2x32xf32> to vector<2x32xf32>
    %3 = math.tanh %2 : vector<2x32xf32>
    %c1 = arith.constant 1 : index
    %c0_4 = arith.constant 0 : index
    %c0_5 = arith.constant 0 : index
    %4 = vector.load %arg1[%c1, %c0_4, %c0_5] : memref<16x2x32xf32, #tpu.memory_space<vmem>>, vector<1x2x32xf32>
    %5 = vector.shape_cast %4 : vector<1x2x32xf32> to vector<2x32xf32>
    %cst = arith.constant dense<0.000000e+00> : vector<2x32xf32>
    %6 = tpu.matmul %3, %0, %cst {dimension_numbers = #tpu.dot_dimension_numbers<[1], [0], [0], [1], [0, 0, 1, 1], [], []>} : vector<2x32xf32>, vector<32x32xf32>, vector<2x32xf32> -> vector<2x32xf32>
    %7 = arith.addf %5, %6 : vector<2x32xf32>
    %8 = math.tanh %7 : vector<2x32xf32>
    %c2 = arith.constant 2 : index
    %c0_6 = arith.constant 0 : index
    %c0_7 = arith.constant 0 : index
    %9 = vector.load %arg1[%c2, %c0_6, %c0_7] : memref<16x2x32xf32, #tpu.memory_space<vmem>>, vector<1x2x32xf32>
    %10 = vector.shape_cast %9 : vector<1x2x32xf32> to vector<2x32xf32>
    %cst_8 = arith.constant dense<0.000000e+00> : vector<2x32xf32>
    %11 = tpu.matmul %8, %0, %cst_8 {dimension_numbers = #tpu.dot_dimension_numbers<[1], [0], [0], [1], [0, 0, 1, 1], [], []>} : vector<2x32xf32>, vector<32x32xf32>, vector<2x32xf32> -> vector<2x32xf32>
    %12 = arith.addf %10, %11 : vector<2x32xf32>
    %13 = math.tanh %12 : vector<2x32xf32>
    %c3 = arith.constant 3 : index
    %c0_9 = arith.constant 0 : index
    %c0_10 = arith.constant 0 : index
    %14 = vector.load %arg1[%c3, %c0_9, %c0_10] : memref<16x2x32xf32, #tpu.memory_space<vmem>>, vector<1x2x32xf32>
    %15 = vector.shape_cast %14 : vector<1x2x32xf32> to vector<2x32xf32>
    %cst_11 = arith.constant dense<0.000000e+00> : vector<2x32xf32>
    %16 = tpu.matmul %13, %0, %cst_11 {dimension_numbers = #tpu.dot_dimension_numbers<[1], [0], [0], [1], [0, 0, 1, 1], [], []>} : vector<2x32xf32>, vector<32x32xf32>, vector<2x32xf32> -> vector<2x32xf32>
    %17 = arith.addf %15, %16 : vector<2x32xf32>
    %18 = math.tanh %17 : vector<2x32xf32>
    %c4 = arith.constant 4 : index
    %c0_12 = arith.constant 0 : index
    %c0_13 = arith.constant 0 : index
    %19 = vector.load %arg1[%c4, %c0_12, %c0_13] : memref<16x2x32xf32, #tpu.memory_space<vmem>>, vector<1x2x32xf32>
    %20 = vector.shape_cast %19 : vector<1x2x32xf32> to vector<2x32xf32>
    %cst_14 = arith.constant dense<0.000000e+00> : vector<2x32xf32>
    %21 = tpu.matmul %18, %0, %cst_14 {dimension_numbers = #tpu.dot_dimension_numbers<[1], [0], [0], [1], [0, 0, 1, 1], [], []>} : vector<2x32xf32>, vector<32x32xf32>, vector<2x32xf32> -> vector<2x32xf32>
    %22 = arith.addf %20, %21 : vector<2x32xf32>
    %23 = math.tanh %22 : vector<2x32xf32>
    %c5 = arith.constant 5 : index
    %c0_15 = arith.constant 0 : index
    %c0_16 = arith.constant 0 : index
    %24 = vector.load %arg1[%c5, %c0_15, %c0_16] : memref<16x2x32xf32, #tpu.memory_space<vmem>>, vector<1x2x32xf32>
    %25 = vector.shape_cast %24 : vector<1x2x32xf32> to vector<2x32xf32>
    %cst_17 = arith.constant dense<0.000000e+00> : vector<2x32xf32>
    %26 = tpu.matmul %23, %0, %cst_17 {dimension_numbers = #tpu.dot_dimension_numbers<[1], [0], [0], [1], [0, 0, 1, 1], [], []>} : vector<2x32xf32>, vector<32x32xf32>, vector<2x32xf32> -> vector<2x32xf32>
    %27 = arith.addf %25, %26 : vector<2x32xf32>
    %28 = math.tanh %27 : vector<2x32xf32>
    %c6 = arith.constant 6 : index
    %c0_18 = arith.constant 0 : index
    %c0_19 = arith.constant 0 : index
    %29 = vector.load %arg1[%c6, %c0_18, %c0_19] : memref<16x2x32xf32, #tpu.memory_space<vmem>>, vector<1x2x32xf32>
    %30 = vector.shape_cast %29 : vector<1x2x32xf32> to vector<2x32xf32>
    %cst_20 = arith.constant dense<0.000000e+00> : vector<2x32xf32>
    %31 = tpu.matmul %28, %0, %cst_20 {dimension_numbers = #tpu.dot_dimension_numbers<[1], [0], [0], [1], [0, 0, 1, 1], [], []>} : vector<2x32xf32>, vector<32x32xf32>, vector<2x32xf32> -> vector<2x32xf32>
    %32 = arith.addf %30, %31 : vector<2x32xf32>
    %33 = math.tanh %32 : vector<2x32xf32>
    %c7 = arith.constant 7 : index
    %c0_21 = arith.constant 0 : index
    %c0_22 = arith.constant 0 : index
    %34 = vector.load %arg1[%c7, %c0_21, %c0_22] : memref<16x2x32xf32, #tpu.memory_space<vmem>>, vector<1x2x32xf32>
    %35 = vector.shape_cast %34 : vector<1x2x32xf32> to vector<2x32xf32>
    %cst_23 = arith.constant dense<0.000000e+00> : vector<2x32xf32>
    %36 = tpu.matmul %33, %0, %cst_23 {dimension_numbers = #tpu.dot_dimension_numbers<[1], [0], [0], [1], [0, 0, 1, 1], [], []>} : vector<2x32xf32>, vector<32x32xf32>, vector<2x32xf32> -> vector<2x32xf32>
    %37 = arith.addf %35, %36 : vector<2x32xf32>
    %38 = math.tanh %37 : vector<2x32xf32>
    %c8 = arith.constant 8 : index
    %c0_24 = arith.constant 0 : index
    %c0_25 = arith.constant 0 : index
    %39 = vector.load %arg1[%c8, %c0_24, %c0_25] : memref<16x2x32xf32, #tpu.memory_space<vmem>>, vector<1x2x32xf32>
    %40 = vector.shape_cast %39 : vector<1x2x32xf32> to vector<2x32xf32>
    %cst_26 = arith.constant dense<0.000000e+00> : vector<2x32xf32>
    %41 = tpu.matmul %38, %0, %cst_26 {dimension_numbers = #tpu.dot_dimension_numbers<[1], [0], [0], [1], [0, 0, 1, 1], [], []>} : vector<2x32xf32>, vector<32x32xf32>, vector<2x32xf32> -> vector<2x32xf32>
    %42 = arith.addf %40, %41 : vector<2x32xf32>
    %43 = math.tanh %42 : vector<2x32xf32>
    %c9 = arith.constant 9 : index
    %c0_27 = arith.constant 0 : index
    %c0_28 = arith.constant 0 : index
    %44 = vector.load %arg1[%c9, %c0_27, %c0_28] : memref<16x2x32xf32, #tpu.memory_space<vmem>>, vector<1x2x32xf32>
    %45 = vector.shape_cast %44 : vector<1x2x32xf32> to vector<2x32xf32>
    %cst_29 = arith.constant dense<0.000000e+00> : vector<2x32xf32>
    %46 = tpu.matmul %43, %0, %cst_29 {dimension_numbers = #tpu.dot_dimension_numbers<[1], [0], [0], [1], [0, 0, 1, 1], [], []>} : vector<2x32xf32>, vector<32x32xf32>, vector<2x32xf32> -> vector<2x32xf32>
    %47 = arith.addf %45, %46 : vector<2x32xf32>
    %48 = math.tanh %47 : vector<2x32xf32>
    %c10 = arith.constant 10 : index
    %c0_30 = arith.constant 0 : index
    %c0_31 = arith.constant 0 : index
    %49 = vector.load %arg1[%c10, %c0_30, %c0_31] : memref<16x2x32xf32, #tpu.memory_space<vmem>>, vector<1x2x32xf32>
    %50 = vector.shape_cast %49 : vector<1x2x32xf32> to vector<2x32xf32>
    %cst_32 = arith.constant dense<0.000000e+00> : vector<2x32xf32>
    %51 = tpu.matmul %48, %0, %cst_32 {dimension_numbers = #tpu.dot_dimension_numbers<[1], [0], [0], [1], [0, 0, 1, 1], [], []>} : vector<2x32xf32>, vector<32x32xf32>, vector<2x32xf32> -> vector<2x32xf32>
    %52 = arith.addf %50, %51 : vector<2x32xf32>
    %53 = math.tanh %52 : vector<2x32xf32>
    %c11 = arith.constant 11 : index
    %c0_33 = arith.constant 0 : index
    %c0_34 = arith.constant 0 : index
    %54 = vector.load %arg1[%c11, %c0_33, %c0_34] : memref<16x2x32xf32, #tpu.memory_space<vmem>>, vector<1x2x32xf32>
    %55 = vector.shape_cast %54 : vector<1x2x32xf32> to vector<2x32xf32>
    %cst_35 = arith.constant dense<0.000000e+00> : vector<2x32xf32>
    %56 = tpu.matmul %53, %0, %cst_35 {dimension_numbers = #tpu.dot_dimension_numbers<[1], [0], [0], [1], [0, 0, 1, 1], [], []>} : vector<2x32xf32>, vector<32x32xf32>, vector<2x32xf32> -> vector<2x32xf32>
    %57 = arith.addf %55, %56 : vector<2x32xf32>
    %58 = math.tanh %57 : vector<2x32xf32>
    %c12 = arith.constant 12 : index
    %c0_36 = arith.constant 0 : index
    %c0_37 = arith.constant 0 : index
    %59 = vector.load %arg1[%c12, %c0_36, %c0_37] : memref<16x2x32xf32, #tpu.memory_space<vmem>>, vector<1x2x32xf32>
    %60 = vector.shape_cast %59 : vector<1x2x32xf32> to vector<2x32xf32>
    %cst_38 = arith.constant dense<0.000000e+00> : vector<2x32xf32>
    %61 = tpu.matmul %58, %0, %cst_38 {dimension_numbers = #tpu.dot_dimension_numbers<[1], [0], [0], [1], [0, 0, 1, 1], [], []>} : vector<2x32xf32>, vector<32x32xf32>, vector<2x32xf32> -> vector<2x32xf32>
    %62 = arith.addf %60, %61 : vector<2x32xf32>
    %63 = math.tanh %62 : vector<2x32xf32>
    %c13 = arith.constant 13 : index
    %c0_39 = arith.constant 0 : index
    %c0_40 = arith.constant 0 : index
    %64 = vector.load %arg1[%c13, %c0_39, %c0_40] : memref<16x2x32xf32, #tpu.memory_space<vmem>>, vector<1x2x32xf32>
    %65 = vector.shape_cast %64 : vector<1x2x32xf32> to vector<2x32xf32>
    %cst_41 = arith.constant dense<0.000000e+00> : vector<2x32xf32>
    %66 = tpu.matmul %63, %0, %cst_41 {dimension_numbers = #tpu.dot_dimension_numbers<[1], [0], [0], [1], [0, 0, 1, 1], [], []>} : vector<2x32xf32>, vector<32x32xf32>, vector<2x32xf32> -> vector<2x32xf32>
    %67 = arith.addf %65, %66 : vector<2x32xf32>
    %68 = math.tanh %67 : vector<2x32xf32>
    %c14 = arith.constant 14 : index
    %c0_42 = arith.constant 0 : index
    %c0_43 = arith.constant 0 : index
    %69 = vector.load %arg1[%c14, %c0_42, %c0_43] : memref<16x2x32xf32, #tpu.memory_space<vmem>>, vector<1x2x32xf32>
    %70 = vector.shape_cast %69 : vector<1x2x32xf32> to vector<2x32xf32>
    %cst_44 = arith.constant dense<0.000000e+00> : vector<2x32xf32>
    %71 = tpu.matmul %68, %0, %cst_44 {dimension_numbers = #tpu.dot_dimension_numbers<[1], [0], [0], [1], [0, 0, 1, 1], [], []>} : vector<2x32xf32>, vector<32x32xf32>, vector<2x32xf32> -> vector<2x32xf32>
    %72 = arith.addf %70, %71 : vector<2x32xf32>
    %73 = math.tanh %72 : vector<2x32xf32>
    %c15 = arith.constant 15 : index
    %c0_45 = arith.constant 0 : index
    %c0_46 = arith.constant 0 : index
    %74 = vector.load %arg1[%c15, %c0_45, %c0_46] : memref<16x2x32xf32, #tpu.memory_space<vmem>>, vector<1x2x32xf32>
    %75 = vector.shape_cast %74 : vector<1x2x32xf32> to vector<2x32xf32>
    %cst_47 = arith.constant dense<0.000000e+00> : vector<2x32xf32>
    %76 = tpu.matmul %73, %0, %cst_47 {dimension_numbers = #tpu.dot_dimension_numbers<[1], [0], [0], [1], [0, 0, 1, 1], [], []>} : vector<2x32xf32>, vector<32x32xf32>, vector<2x32xf32> -> vector<2x32xf32>
    %77 = arith.addf %75, %76 : vector<2x32xf32>
    %78 = math.tanh %77 : vector<2x32xf32>
    %c0_48 = arith.constant 0 : index
    %c0_49 = arith.constant 0 : index
    %79 = vector.load %arg3[%c0_48, %c0_49] : memref<32x4xf32, #tpu.memory_space<vmem>>, vector<32x4xf32>
    %cst_50 = arith.constant dense<0.000000e+00> : vector<2x4xf32>
    %80 = tpu.matmul %78, %79, %cst_50 {dimension_numbers = #tpu.dot_dimension_numbers<[1], [0], [0], [1], [0, 0, 1, 1], [], []>} : vector<2x32xf32>, vector<32x4xf32>, vector<2x4xf32> -> vector<2x4xf32>
    %c0_51 = arith.constant 0 : index
    %c0_52 = arith.constant 0 : index
    %81 = vector.load %arg4[%c0_51, %c0_52] : memref<1x4xf32, #tpu.memory_space<vmem>>, vector<1x4xf32>
    %82 = vector.broadcast %81 : vector<1x4xf32> to vector<2x4xf32>
    %83 = arith.addf %80, %82 : vector<2x4xf32>
    %c0_53 = arith.constant 0 : index
    %c0_54 = arith.constant 0 : index
    %84 = vector.load %arg5[%c0_53, %c0_54] : memref<2x4xf32, #tpu.memory_space<vmem>>, vector<2x4xf32>
    tpu.vector_store %arg5[%c0_53, %c0_54], %83 {strides = array<i32>} : memref<2x4xf32, #tpu.memory_space<vmem>>, vector<2x4xf32>,
    return
  }
  func.func @transform_0(%arg0: i32) -> (i32, i32, i32) {
    %c0_i32 = arith.constant 0 : i32
    %c0_i32_0 = arith.constant 0 : i32
    %c0_i32_1 = arith.constant 0 : i32
    %c0_i32_2 = arith.constant 0 : i32
    return %c0_i32, %c0_i32_0, %c0_i32_1 : i32, i32, i32
  }
  func.func @transform_1(%arg0: i32) -> (i32, i32) {
    %c0_i32 = arith.constant 0 : i32
    %c0_i32_0 = arith.constant 0 : i32
    %c0_i32_1 = arith.constant 0 : i32
    return %c0_i32, %c0_i32_0 : i32, i32
  }
  func.func @transform_2(%arg0: i32) -> (i32, i32) {
    %c0_i32 = arith.constant 0 : i32
    %c0_i32_0 = arith.constant 0 : i32
    %c0_i32_1 = arith.constant 0 : i32
    return %c0_i32, %c0_i32_0 : i32, i32
  }
  func.func @transform_3(%arg0: i32) -> (i32, i32) {
    %c0_i32 = arith.constant 0 : i32
    %c0_i32_0 = arith.constant 0 : i32
    %c0_i32_1 = arith.constant 0 : i32
    return %c0_i32, %c0_i32_0 : i32, i32
  }
  func.func @transform_4(%arg0: i32) -> (i32, i32) {
    %c0_i32 = arith.constant 0 : i32
    %c0_i32_0 = arith.constant 0 : i32
    %c0_i32_1 = arith.constant 0 : i32
    return %c0_i32, %c0_i32_0 : i32, i32
  }
}

</mosaic_0001>

<llo_original>
// kernel: rnn_forward.1
$region0: #{rnn_forward.1}
  #allocation0 [shape = 'u32[]', space=smem, size = 0x4, offset = 0x4, fixed_abs, tag = 'smem constant byte address 0x4 - core index']
  #allocation1 [shape = 'u32[144,128]{1,0:T(1,128)}', space=vmem, size = 0x12000, scoped, tag = 'internal scratch']
  %s0 = inlined_call_operand.vmem [shape: f32[16,2,32], index: 0, kind: input, shape index: {}]
  %s1 = inlined_call_operand.vmem [shape: f32[32,32], index: 1, kind: input, shape index: {}]
  %s2 = inlined_call_operand.vmem [shape: f32[32,4], index: 2, kind: input, shape index: {}]
  %s3 = inlined_call_operand.vmem [shape: f32[1,4], index: 3, kind: input, shape index: {}]
  %s4 = inlined_call_operand.hbm [shape: f32[2,4], index: 4, kind: output, shape index: {}]
  %s5 = sld [smem:[#allocation0]]
  $region26: #{rnn_forward.1} parent=0
    _
  %s7 = ssub.s32 1, %s5
  %s8 = scalar_select 0, %s7, %s5
  $region1: #{rnn_forward.1} parent=0
    #allocation2 [shape = 'u8[1024]{0}', space=vmem, size = 0x400, scoped, tag = 'output window, operand 0, single buffered']
    #allocation3 [shape = 's32[1]{0}', space=sflag, size = 0x4, scoped, tag = 'scoped memory for rnn_forward.1']
    %9 = vsyncpa [#allocation3], 0
    // Predicated region
    $region2: #{rnn_forward.1} parent=1 // pred_check
      _
    $region3: #{rnn_forward.1} parent=1 // pred_check_branch
      %11 = sbr.rel (0) target = $region5
    $region4: #{rnn_forward.1} parent=1 // pred_region
      _
    $region5: #{rnn_forward.1} parent=1 // pred_fallthru
      _
    // Predicated region
    $region6: #{rnn_forward.1} parent=1 // pred_check
      _
    $region7: #{rnn_forward.1} parent=1 // pred_check_branch
      %13 = sbr.rel (0) target = $region9
    $region8: #{rnn_forward.1} parent=1 // pred_region
      _
    $region9: #{rnn_forward.1} parent=1 // pred_fallthru
      _
    // Predicated region
    $region10: #{rnn_forward.1} parent=1 // pred_check
      _
    $region11: #{rnn_forward.1} parent=1 // pred_check_branch
      %15 = sbr.rel (0) target = $region13
    $region12: #{rnn_forward.1} parent=1 // pred_region
      _
    $region13: #{rnn_forward.1} parent=1 // pred_fallthru
      _
    // Predicated region
    $region14: #{rnn_forward.1} parent=1 // pred_check
      _
    $region15: #{rnn_forward.1} parent=1 // pred_check_branch
      %17 = sbr.rel (0) target = $region17
    $region16: #{rnn_forward.1} parent=1 // pred_region
      _
    $region17: #{rnn_forward.1} parent=1 // pred_fallthru
      _
    %v18 = vld [vmem:[%s1] sm:$0xff]
    %v19 = vld [vmem:[%s1 + $0x8] sm:$0xff]
    %v20 = vld [vmem:[%s1 + $0x10] sm:$0xff]
    %v21 = vld [vmem:[%s1 + $0x18] sm:$0xff]
    %v22 = vld [vmem:[%s0] sm:$0x3]
    %v23 = vtanh.pop %v22
    %s24 = scalar_lea.vmem %s0, 2
    %v25 = vld [vmem:[%s24] sm:$0x3]
    %vm26 = vcmask 261120
    %v28 = vsel %vm26, %v23, 0
    %30 = vmatprep.subr.mxu0 0.0
    %31 = vmatpush1.msra.mxu0 0.0
    %32 = vmatprep.subr.mxu0 0.0
    %33 = vmatpush1.msra.mxu0 0.0
    %34 = vmatprep.subr.mxu0 0.0
    %35 = vmatpush1.msra.mxu0 0.0
    %36 = vmatprep.subr.mxu0 0.0
    %37 = vmatpush1.msra.mxu0 0.0
    %38 = vmatprep.subr.mxu0 0.0
    %39 = vmatpush1.msra.mxu0 0.0
    %40 = vmatprep.subr.mxu0 0.0
    %41 = vmatpush1.msra.mxu0 0.0
    %42 = vmatprep.subr.mxu0 0.0
    %43 = vmatpush1.msra.mxu0 0.0
    %44 = vmatprep.subr.mxu0 0.0
    %45 = vmatpush1.msra.mxu0 0.0
    %46 = vmatprep.subr.mxu0 0.0
    %47 = vmatpush1.msra.mxu0 0.0
    %48 = vmatprep.subr.mxu0 0.0
    %49 = vmatpush1.msra.mxu0 0.0
    %50 = vmatprep.subr.mxu0 0.0
    %51 = vmatpush1.msra.mxu0 0.0
    %52 = vmatprep.subr.mxu0 0.0
    %53 = vmatpush1.msra.mxu0 0.0
    %54 = vmatprep.subr.mxu0 0.0
    %55 = vmatpush1.msra.mxu0 %v21
    %56 = vmatprep.subr.mxu0 0.0
    %57 = vmatpush1.msra.mxu0 %v20
    %58 = vmatprep.subr.mxu0 0.0
    %59 = vmatpush1.msra.mxu0 %v19
    %60 = vmatprep.subr.mxu0 0.0
    %61 = vmatpush1.msra.mxu0 %v18
    %62 = vmatprep.subr.mxu0 0.0
    %63 = vmatpush2.msra.mxu0 0.0
    %64 = vmatprep.subr.mxu0 0.0
    %65 = vmatpush2.msra.mxu0 0.0
    %66 = vmatprep.subr.mxu0 0.0
    %67 = vmatpush2.msra.mxu0 0.0
    %68 = vmatprep.subr.mxu0 0.0
    %69 = vmatpush2.msra.mxu0 0.0
    %70 = vmatprep.subr.mxu0 0.0
    %71 = vmatpush2.msra.mxu0 0.0
    %72 = vmatprep.subr.mxu0 0.0
    %73 = vmatpush2.msra.mxu0 0.0
    %74 = vmatprep.subr.mxu0 0.0
    %75 = vmatpush2.msra.mxu0 0.0
    %76 = vmatprep.subr.mxu0 0.0
    %77 = vmatpush2.msra.mxu0 0.0
    %78 = vmatprep.subr.mxu0 0.0
    %79 = vmatpush2.msra.mxu0 0.0
    %80 = vmatprep.subr.mxu0 0.0
    %81 = vmatpush2.msra.mxu0 0.0
    %82 = vmatprep.subr.mxu0 0.0
    %83 = vmatpush2.msra.mxu0 0.0
    %84 = vmatprep.subr.mxu0 0.0
    %85 = vmatpush2.msra.mxu0 0.0
    %86 = vmatprep.subr.mxu0 0.0
    %87 = vmatpush2.msra.mxu0 0.0
    %88 = vmatprep.subr.mxu0 0.0
    %89 = vmatpush2.msra.mxu0 0.0
    %90 = vmatprep.subr.mxu0 0.0
    %91 = vmatpush2.msra.mxu0 0.0
    %92 = vmatprep.subr.mxu0 0.0
    %93 = vmatpush2.msra.mxu0 0.0
    %94 = vmatprep.mubr.f32.mxu0 0.0
    %95 = vmatmul.mubr.f32.gmra.mxu0 %v28
    %v96 = vpop.f32.mrf.mxu0
    %v97 = vadd.f32 0.0, %v96
    %v98 = vpop.f32.mrf.mxu0
    %99 = vdwg.mxu0
    %v100 = vadd.f32 %v25, %v97
    %v101 = vtanh.pop %v100
    %s102 = scalar_lea.vmem %s0, 4
    %v103 = vld [vmem:[%s102] sm:$0x3]
    %v105 = vsel %vm26, %v101, 0
    %107 = vmatprep.subr.mxu0 0.0
    %108 = vmatpush1.msra.mxu0 0.0
    %109 = vmatprep.subr.mxu0 0.0
    %110 = vmatpush1.msra.mxu0 0.0
    %111 = vmatprep.subr.mxu0 0.0
    %112 = vmatpush1.msra.mxu0 0.0
    %113 = vmatprep.subr.mxu0 0.0
    %114 = vmatpush1.msra.mxu0 0.0
    %115 = vmatprep.subr.mxu0 0.0
    %116 = vmatpush1.msra.mxu0 0.0
    %117 = vmatprep.subr.mxu0 0.0
    %118 = vmatpush1.msra.mxu0 0.0
    %119 = vmatprep.subr.mxu0 0.0
    %120 = vmatpush1.msra.mxu0 0.0
    %121 = vmatprep.subr.mxu0 0.0
    %122 = vmatpush1.msra.mxu0 0.0
    %123 = vmatprep.subr.mxu0 0.0
    %124 = vmatpush1.msra.mxu0 0.0
    %125 = vmatprep.subr.mxu0 0.0
    %126 = vmatpush1.msra.mxu0 0.0
    %127 = vmatprep.subr.mxu0 0.0
    %128 = vmatpush1.msra.mxu0 0.0
    %129 = vmatprep.subr.mxu0 0.0
    %130 = vmatpush1.msra.mxu0 0.0
    %131 = vmatprep.subr.mxu0 0.0
    %132 = vmatpush1.msra.mxu0 %v21
    %133 = vmatprep.subr.mxu0 0.0
    %134 = vmatpush1.msra.mxu0 %v20
    %135 = vmatprep.subr.mxu0 0.0
    %136 = vmatpush1.msra.mxu0 %v19
    %137 = vmatprep.subr.mxu0 0.0
    %138 = vmatpush1.msra.mxu0 %v18
    %139 = vmatprep.subr.mxu0 0.0
    %140 = vmatpush2.msra.mxu0 0.0
    %141 = vmatprep.subr.mxu0 0.0
    %142 = vmatpush2.msra.mxu0 0.0
    %143 = vmatprep.subr.mxu0 0.0
    %144 = vmatpush2.msra.mxu0 0.0
    %145 = vmatprep.subr.mxu0 0.0
    %146 = vmatpush2.msra.mxu0 0.0
    %147 = vmatprep.subr.mxu0 0.0
    %148 = vmatpush2.msra.mxu0 0.0
    %149 = vmatprep.subr.mxu0 0.0
    %150 = vmatpush2.msra.mxu0 0.0
    %151 = vmatprep.subr.mxu0 0.0
    %152 = vmatpush2.msra.mxu0 0.0
    %153 = vmatprep.subr.mxu0 0.0
    %154 = vmatpush2.msra.mxu0 0.0
    %155 = vmatprep.subr.mxu0 0.0
    %156 = vmatpush2.msra.mxu0 0.0
    %157 = vmatprep.subr.mxu0 0.0
    %158 = vmatpush2.msra.mxu0 0.0
    %159 = vmatprep.subr.mxu0 0.0
    %160 = vmatpush2.msra.mxu0 0.0
    %161 = vmatprep.subr.mxu0 0.0
    %162 = vmatpush2.msra.mxu0 0.0
    %163 = vmatprep.subr.mxu0 0.0
    %164 = vmatpush2.msra.mxu0 0.0
    %165 = vmatprep.subr.mxu0 0.0
    %166 = vmatpush2.msra.mxu0 0.0
    %167 = vmatprep.subr.mxu0 0.0
    %168 = vmatpush2.msra.mxu0 0.0
    %169 = vmatprep.subr.mxu0 0.0
    %170 = vmatpush2.msra.mxu0 0.0
    %171 = vmatprep.mubr.f32.mxu0 0.0
    %172 = vmatmul.mubr.f32.gmra.mxu0 %v105
    %v173 = vpop.f32.mrf.mxu0
    %v174 = vadd.f32 0.0, %v173
    %v175 = vpop.f32.mrf.mxu0
    %176 = vdwg.mxu0
    %v177 = vadd.f32 %v103, %v174
    %v178 = vtanh.pop %v177
    %s179 = scalar_lea.vmem %s0, 6
    %v180 = vld [vmem:[%s179] sm:$0x3]
    %v182 = vsel %vm26, %v178, 0
    %184 = vmatprep.subr.mxu0 0.0
    %185 = vmatpush1.msra.mxu0 0.0
    %186 = vmatprep.subr.mxu0 0.0
    %187 = vmatpush1.msra.mxu0 0.0
    %188 = vmatprep.subr.mxu0 0.0
    %189 = vmatpush1.msra.mxu0 0.0
    %190 = vmatprep.subr.mxu0 0.0
    %191 = vmatpush1.msra.mxu0 0.0
    %192 = vmatprep.subr.mxu0 0.0
    %193 = vmatpush1.msra.mxu0 0.0
    %194 = vmatprep.subr.mxu0 0.0
    %195 = vmatpush1.msra.mxu0 0.0
    %196 = vmatprep.subr.mxu0 0.0
    %197 = vmatpush1.msra.mxu0 0.0
    %198 = vmatprep.subr.mxu0 0.0
    %199 = vmatpush1.msra.mxu0 0.0
    %200 = vmatprep.subr.mxu0 0.0
    %201 = vmatpush1.msra.mxu0 0.0
    %202 = vmatprep.subr.mxu0 0.0
    %203 = vmatpush1.msra.mxu0 0.0
    %204 = vmatprep.subr.mxu0 0.0
    %205 = vmatpush1.msra.mxu0 0.0
    %206 = vmatprep.subr.mxu0 0.0
    %207 = vmatpush1.msra.mxu0 0.0
    %208 = vmatprep.subr.mxu0 0.0
    %209 = vmatpush1.msra.mxu0 %v21
    %210 = vmatprep.subr.mxu0 0.0
    %211 = vmatpush1.msra.mxu0 %v20
    %212 = vmatprep.subr.mxu0 0.0
    %213 = vmatpush1.msra.mxu0 %v19
    %214 = vmatprep.subr.mxu0 0.0
    %215 = vmatpush1.msra.mxu0 %v18
    %216 = vmatprep.subr.mxu0 0.0
    %217 = vmatpush2.msra.mxu0 0.0
    %218 = vmatprep.subr.mxu0 0.0
    %219 = vmatpush2.msra.mxu0 0.0
    %220 = vmatprep.subr.mxu0 0.0
    %221 = vmatpush2.msra.mxu0 0.0
    %222 = vmatprep.subr.mxu0 0.0
    %223 = vmatpush2.msra.mxu0 0.0
    %224 = vmatprep.subr.mxu0 0.0
    %225 = vmatpush2.msra.mxu0 0.0
    %226 = vmatprep.subr.mxu0 0.0
    %227 = vmatpush2.msra.mxu0 0.0
    %228 = vmatprep.subr.mxu0 0.0
    %229 = vmatpush2.msra.mxu0 0.0
    %230 = vmatprep.subr.mxu0 0.0
    %231 = vmatpush2.msra.mxu0 0.0
    %232 = vmatprep.subr.mxu0 0.0
    %233 = vmatpush2.msra.mxu0 0.0
    %234 = vmatprep.subr.mxu0 0.0
    %235 = vmatpush2.msra.mxu0 0.0
    %236 = vmatprep.subr.mxu0 0.0
    %237 = vmatpush2.msra.mxu0 0.0
    %238 = vmatprep.subr.mxu0 0.0
    %239 = vmatpush2.msra.mxu0 0.0
    %240 = vmatprep.subr.mxu0 0.0
    %241 = vmatpush2.msra.mxu0 0.0
    %242 = vmatprep.subr.mxu0 0.0
    %243 = vmatpush2.msra.mxu0 0.0
    %244 = vmatprep.subr.mxu0 0.0
    %245 = vmatpush2.msra.mxu0 0.0
    %246 = vmatprep.subr.mxu0 0.0
    %247 = vmatpush2.msra.mxu0 0.0
    %248 = vmatprep.mubr.f32.mxu0 0.0
    %249 = vmatmul.mubr.f32.gmra.mxu0 %v182
    %v250 = vpop.f32.mrf.mxu0
    %v251 = vadd.f32 0.0, %v250
    %v252 = vpop.f32.mrf.mxu0
    %253 = vdwg.mxu0
    %v254 = vadd.f32 %v180, %v251
    %v255 = vtanh.pop %v254
    %s256 = scalar_lea.vmem %s0, 8
    %v257 = vld [vmem:[%s256] sm:$0x3]
    %v259 = vsel %vm26, %v255, 0
    %261 = vmatprep.subr.mxu0 0.0
    %262 = vmatpush1.msra.mxu0 0.0
    %263 = vmatprep.subr.mxu0 0.0
    %264 = vmatpush1.msra.mxu0 0.0
    %265 = vmatprep.subr.mxu0 0.0
    %266 = vmatpush1.msra.mxu0 0.0
    %267 = vmatprep.subr.mxu0 0.0
    %268 = vmatpush1.msra.mxu0 0.0
    %269 = vmatprep.subr.mxu0 0.0
    %270 = vmatpush1.msra.mxu0 0.0
    %271 = vmatprep.subr.mxu0 0.0
    %272 = vmatpush1.msra.mxu0 0.0
    %273 = vmatprep.subr.mxu0 0.0
    %274 = vmatpush1.msra.mxu0 0.0
    %275 = vmatprep.subr.mxu0 0.0
    %276 = vmatpush1.msra.mxu0 0.0
    %277 = vmatprep.subr.mxu0 0.0
    %278 = vmatpush1.msra.mxu0 0.0
    %279 = vmatprep.subr.mxu0 0.0
    %280 = vmatpush1.msra.mxu0 0.0
    %281 = vmatprep.subr.mxu0 0.0
    %282 = vmatpush1.msra.mxu0 0.0
    %283 = vmatprep.subr.mxu0 0.0
    %284 = vmatpush1.msra.mxu0 0.0
    %285 = vmatprep.subr.mxu0 0.0
    %286 = vmatpush1.msra.mxu0 %v21
    %287 = vmatprep.subr.mxu0 0.0
    %288 = vmatpush1.msra.mxu0 %v20
    %289 = vmatprep.subr.mxu0 0.0
    %290 = vmatpush1.msra.mxu0 %v19
    %291 = vmatprep.subr.mxu0 0.0
    %292 = vmatpush1.msra.mxu0 %v18
    %293 = vmatprep.subr.mxu0 0.0
    %294 = vmatpush2.msra.mxu0 0.0
    %295 = vmatprep.subr.mxu0 0.0
    %296 = vmatpush2.msra.mxu0 0.0
    %297 = vmatprep.subr.mxu0 0.0
    %298 = vmatpush2.msra.mxu0 0.0
    %299 = vmatprep.subr.mxu0 0.0
    %300 = vmatpush2.msra.mxu0 0.0
    %301 = vmatprep.subr.mxu0 0.0
    %302 = vmatpush2.msra.mxu0 0.0
    %303 = vmatprep.subr.mxu0 0.0
    %304 = vmatpush2.msra.mxu0 0.0
    %305 = vmatprep.subr.mxu0 0.0
    %306 = vmatpush2.msra.mxu0 0.0
    %307 = vmatprep.subr.mxu0 0.0
    %308 = vmatpush2.msra.mxu0 0.0
    %309 = vmatprep.subr.mxu0 0.0
    %310 = vmatpush2.msra.mxu0 0.0
    %311 = vmatprep.subr.mxu0 0.0
    %312 = vmatpush2.msra.mxu0 0.0
    %313 = vmatprep.subr.mxu0 0.0
    %314 = vmatpush2.msra.mxu0 0.0
    %315 = vmatprep.subr.mxu0 0.0
    %316 = vmatpush2.msra.mxu0 0.0
    %317 = vmatprep.subr.mxu0 0.0
    %318 = vmatpush2.msra.mxu0 0.0
    %319 = vmatprep.subr.mxu0 0.0
    %320 = vmatpush2.msra.mxu0 0.0
    %321 = vmatprep.subr.mxu0 0.0
    %322 = vmatpush2.msra.mxu0 0.0
    %323 = vmatprep.subr.mxu0 0.0
    %324 = vmatpush2.msra.mxu0 0.0
    %325 = vmatprep.mubr.f32.mxu0 0.0
    %326 = vmatmul.mubr.f32.gmra.mxu0 %v259
    %v327 = vpop.f32.mrf.mxu0
    %v328 = vadd.f32 0.0, %v327
    %v329 = vpop.f32.mrf.mxu0
    %330 = vdwg.mxu0
    %v331 = vadd.f32 %v257, %v328
    %v332 = vtanh.pop %v331
    %s333 = scalar_lea.vmem %s0, 10
    %v334 = vld [vmem:[%s333] sm:$0x3]
    %v336 = vsel %vm26, %v332, 0
    %338 = vmatprep.subr.mxu0 0.0
    %339 = vmatpush1.msra.mxu0 0.0
    %340 = vmatprep.subr.mxu0 0.0
    %341 = vmatpush1.msra.mxu0 0.0
    %342 = vmatprep.subr.mxu0 0.0
    %343 = vmatpush1.msra.mxu0 0.0
    %344 = vmatprep.subr.mxu0 0.0
    %345 = vmatpush1.msra.mxu0 0.0
    %346 = vmatprep.subr.mxu0 0.0
    %347 = vmatpush1.msra.mxu0 0.0
    %348 = vmatprep.subr.mxu0 0.0
    %349 = vmatpush1.msra.mxu0 0.0
    %350 = vmatprep.subr.mxu0 0.0
    %351 = vmatpush1.msra.mxu0 0.0
    %352 = vmatprep.subr.mxu0 0.0
    %353 = vmatpush1.msra.mxu0 0.0
    %354 = vmatprep.subr.mxu0 0.0
    %355 = vmatpush1.msra.mxu0 0.0
    %356 = vmatprep.subr.mxu0 0.0
    %357 = vmatpush1.msra.mxu0 0.0
    %358 = vmatprep.subr.mxu0 0.0
    %359 = vmatpush1.msra.mxu0 0.0
    %360 = vmatprep.subr.mxu0 0.0
    %361 = vmatpush1.msra.mxu0 0.0
    %362 = vmatprep.subr.mxu0 0.0
    %363 = vmatpush1.msra.mxu0 %v21
    %364 = vmatprep.subr.mxu0 0.0
    %365 = vmatpush1.msra.mxu0 %v20
    %366 = vmatprep.subr.mxu0 0.0
    %367 = vmatpush1.msra.mxu0 %v19
    %368 = vmatprep.subr.mxu0 0.0
    %369 = vmatpush1.msra.mxu0 %v18
    %370 = vmatprep.subr.mxu0 0.0
    %371 = vmatpush2.msra.mxu0 0.0
    %372 = vmatprep.subr.mxu0 0.0
    %373 = vmatpush2.msra.mxu0 0.0
    %374 = vmatprep.subr.mxu0 0.0
    %375 = vmatpush2.msra.mxu0 0.0
    %376 = vmatprep.subr.mxu0 0.0
    %377 = vmatpush2.msra.mxu0 0.0
    %378 = vmatprep.subr.mxu0 0.0
    %379 = vmatpush2.msra.mxu0 0.0
    %380 = vmatprep.subr.mxu0 0.0
    %381 = vmatpush2.msra.mxu0 0.0
    %382 = vmatprep.subr.mxu0 0.0
    %383 = vmatpush2.msra.mxu0 0.0
    %384 = vmatprep.subr.mxu0 0.0
    %385 = vmatpush2.msra.mxu0 0.0
    %386 = vmatprep.subr.mxu0 0.0
    %387 = vmatpush2.msra.mxu0 0.0
    %388 = vmatprep.subr.mxu0 0.0
    %389 = vmatpush2.msra.mxu0 0.0
    %390 = vmatprep.subr.mxu0 0.0
    %391 = vmatpush2.msra.mxu0 0.0
    %392 = vmatprep.subr.mxu0 0.0
    %393 = vmatpush2.msra.mxu0 0.0
    %394 = vmatprep.subr.mxu0 0.0
    %395 = vmatpush2.msra.mxu0 0.0
    %396 = vmatprep.subr.mxu0 0.0
    %397 = vmatpush2.msra.mxu0 0.0
    %398 = vmatprep.subr.mxu0 0.0
    %399 = vmatpush2.msra.mxu0 0.0
    %400 = vmatprep.subr.mxu0 0.0
    %401 = vmatpush2.msra.mxu0 0.0
    %402 = vmatprep.mubr.f32.mxu0 0.0
    %403 = vmatmul.mubr.f32.gmra.mxu0 %v336
    %v404 = vpop.f32.mrf.mxu0
    %v405 = vadd.f32 0.0, %v404
    %v406 = vpop.f32.mrf.mxu0
    %407 = vdwg.mxu0
    %v408 = vadd.f32 %v334, %v405
    %v409 = vtanh.pop %v408
    %s410 = scalar_lea.vmem %s0, 12
    %v411 = vld [vmem:[%s410] sm:$0x3]
    %v413 = vsel %vm26, %v409, 0
    %415 = vmatprep.subr.mxu0 0.0
    %416 = vmatpush1.msra.mxu0 0.0
    %417 = vmatprep.subr.mxu0 0.0
    %418 = vmatpush1.msra.mxu0 0.0
    %419 = vmatprep.subr.mxu0 0.0
    %420 = vmatpush1.msra.mxu0 0.0
    %421 = vmatprep.subr.mxu0 0.0
    %422 = vmatpush1.msra.mxu0 0.0
    %423 = vmatprep.subr.mxu0 0.0
    %424 = vmatpush1.msra.mxu0 0.0
    %425 = vmatprep.subr.mxu0 0.0
    %426 = vmatpush1.msra.mxu0 0.0
    %427 = vmatprep.subr.mxu0 0.0
    %428 = vmatpush1.msra.mxu0 0.0
    %429 = vmatprep.subr.mxu0 0.0
    %430 = vmatpush1.msra.mxu0 0.0
    %431 = vmatprep.subr.mxu0 0.0
    %432 = vmatpush1.msra.mxu0 0.0
    %433 = vmatprep.subr.mxu0 0.0
    %434 = vmatpush1.msra.mxu0 0.0
    %435 = vmatprep.subr.mxu0 0.0
    %436 = vmatpush1.msra.mxu0 0.0
    %437 = vmatprep.subr.mxu0 0.0
    %438 = vmatpush1.msra.mxu0 0.0
    %439 = vmatprep.subr.mxu0 0.0
    %440 = vmatpush1.msra.mxu0 %v21
    %441 = vmatprep.subr.mxu0 0.0
    %442 = vmatpush1.msra.mxu0 %v20
    %443 = vmatprep.subr.mxu0 0.0
    %444 = vmatpush1.msra.mxu0 %v19
    %445 = vmatprep.subr.mxu0 0.0
    %446 = vmatpush1.msra.mxu0 %v18
    %447 = vmatprep.subr.mxu0 0.0
    %448 = vmatpush2.msra.mxu0 0.0
    %449 = vmatprep.subr.mxu0 0.0
    %450 = vmatpush2.msra.mxu0 0.0
    %451 = vmatprep.subr.mxu0 0.0
    %452 = vmatpush2.msra.mxu0 0.0
    %453 = vmatprep.subr.mxu0 0.0
    %454 = vmatpush2.msra.mxu0 0.0
    %455 = vmatprep.subr.mxu0 0.0
    %456 = vmatpush2.msra.mxu0 0.0
    %457 = vmatprep.subr.mxu0 0.0
    %458 = vmatpush2.msra.mxu0 0.0
    %459 = vmatprep.subr.mxu0 0.0
    %460 = vmatpush2.msra.mxu0 0.0
    %461 = vmatprep.subr.mxu0 0.0
    %462 = vmatpush2.msra.mxu0 0.0
    %463 = vmatprep.subr.mxu0 0.0
    %464 = vmatpush2.msra.mxu0 0.0
    %465 = vmatprep.subr.mxu0 0.0
    %466 = vmatpush2.msra.mxu0 0.0
    %467 = vmatprep.subr.mxu0 0.0
    %468 = vmatpush2.msra.mxu0 0.0
    %469 = vmatprep.subr.mxu0 0.0
    %470 = vmatpush2.msra.mxu0 0.0
    %471 = vmatprep.subr.mxu0 0.0
    %472 = vmatpush2.msra.mxu0 0.0
    %473 = vmatprep.subr.mxu0 0.0
    %474 = vmatpush2.msra.mxu0 0.0
    %475 = vmatprep.subr.mxu0 0.0
    %476 = vmatpush2.msra.mxu0 0.0
    %477 = vmatprep.subr.mxu0 0.0
    %478 = vmatpush2.msra.mxu0 0.0
    %479 = vmatprep.mubr.f32.mxu0 0.0
    %480 = vmatmul.mubr.f32.gmra.mxu0 %v413
    %v481 = vpop.f32.mrf.mxu0
    %v482 = vadd.f32 0.0, %v481
    %v483 = vpop.f32.mrf.mxu0
    %484 = vdwg.mxu0
    %v485 = vadd.f32 %v411, %v482
    %v486 = vtanh.pop %v485
    %s487 = scalar_lea.vmem %s0, 14
    %v488 = vld [vmem:[%s487] sm:$0x3]
    %v490 = vsel %vm26, %v486, 0
    %492 = vmatprep.subr.mxu0 0.0
    %493 = vmatpush1.msra.mxu0 0.0
    %494 = vmatprep.subr.mxu0 0.0
    %495 = vmatpush1.msra.mxu0 0.0
    %496 = vmatprep.subr.mxu0 0.0
    %497 = vmatpush1.msra.mxu0 0.0
    %498 = vmatprep.subr.mxu0 0.0
    %499 = vmatpush1.msra.mxu0 0.0
    %500 = vmatprep.subr.mxu0 0.0
    %501 = vmatpush1.msra.mxu0 0.0
    %502 = vmatprep.subr.mxu0 0.0
    %503 = vmatpush1.msra.mxu0 0.0
    %504 = vmatprep.subr.mxu0 0.0
    %505 = vmatpush1.msra.mxu0 0.0
    %506 = vmatprep.subr.mxu0 0.0
    %507 = vmatpush1.msra.mxu0 0.0
    %508 = vmatprep.subr.mxu0 0.0
    %509 = vmatpush1.msra.mxu0 0.0
    %510 = vmatprep.subr.mxu0 0.0
    %511 = vmatpush1.msra.mxu0 0.0
    %512 = vmatprep.subr.mxu0 0.0
    %513 = vmatpush1.msra.mxu0 0.0
    %514 = vmatprep.subr.mxu0 0.0
    %515 = vmatpush1.msra.mxu0 0.0
    %516 = vmatprep.subr.mxu0 0.0
    %517 = vmatpush1.msra.mxu0 %v21
    %518 = vmatprep.subr.mxu0 0.0
    %519 = vmatpush1.msra.mxu0 %v20
    %520 = vmatprep.subr.mxu0 0.0
    %521 = vmatpush1.msra.mxu0 %v19
    %522 = vmatprep.subr.mxu0 0.0
    %523 = vmatpush1.msra.mxu0 %v18
    %524 = vmatprep.subr.mxu0 0.0
    %525 = vmatpush2.msra.mxu0 0.0
    %526 = vmatprep.subr.mxu0 0.0
    %527 = vmatpush2.msra.mxu0 0.0
    %528 = vmatprep.subr.mxu0 0.0
    %529 = vmatpush2.msra.mxu0 0.0
    %530 = vmatprep.subr.mxu0 0.0
    %531 = vmatpush2.msra.mxu0 0.0
    %532 = vmatprep.subr.mxu0 0.0
    %533 = vmatpush2.msra.mxu0 0.0
    %534 = vmatprep.subr.mxu0 0.0
    %535 = vmatpush2.msra.mxu0 0.0
    %536 = vmatprep.subr.mxu0 0.0
    %537 = vmatpush2.msra.mxu0 0.0
    %538 = vmatprep.subr.mxu0 0.0
    %539 = vmatpush2.msra.mxu0 0.0
    %540 = vmatprep.subr.mxu0 0.0
    %541 = vmatpush2.msra.mxu0 0.0
    %542 = vmatprep.subr.mxu0 0.0
    %543 = vmatpush2.msra.mxu0 0.0
    %544 = vmatprep.subr.mxu0 0.0
    %545 = vmatpush2.msra.mxu0 0.0
    %546 = vmatprep.subr.mxu0 0.0
    %547 = vmatpush2.msra.mxu0 0.0
    %548 = vmatprep.subr.mxu0 0.0
    %549 = vmatpush2.msra.mxu0 0.0
    %550 = vmatprep.subr.mxu0 0.0
    %551 = vmatpush2.msra.mxu0 0.0
    %552 = vmatprep.subr.mxu0 0.0
    %553 = vmatpush2.msra.mxu0 0.0
    %554 = vmatprep.subr.mxu0 0.0
    %555 = vmatpush2.msra.mxu0 0.0
    %556 = vmatprep.mubr.f32.mxu0 0.0
    %557 = vmatmul.mubr.f32.gmra.mxu0 %v490
    %v558 = vpop.f32.mrf.mxu0
    %v559 = vadd.f32 0.0, %v558
    %v560 = vpop.f32.mrf.mxu0
    %561 = vdwg.mxu0
    %v562 = vadd.f32 %v488, %v559
    %v563 = vtanh.pop %v562
    %s564 = scalar_lea.vmem %s0, 16
    %v565 = vld [vmem:[%s564] sm:$0x3]
    %v567 = vsel %vm26, %v563, 0
    %569 = vmatprep.subr.mxu0 0.0
    %570 = vmatpush1.msra.mxu0 0.0
    %571 = vmatprep.subr.mxu0 0.0
    %572 = vmatpush1.msra.mxu0 0.0
    %573 = vmatprep.subr.mxu0 0.0
    %574 = vmatpush1.msra.mxu0 0.0
    %575 = vmatprep.subr.mxu0 0.0
    %576 = vmatpush1.msra.mxu0 0.0
    %577 = vmatprep.subr.mxu0 0.0
    %578 = vmatpush1.msra.mxu0 0.0
    %579 = vmatprep.subr.mxu0 0.0
    %580 = vmatpush1.msra.mxu0 0.0
    %581 = vmatprep.subr.mxu0 0.0
    %582 = vmatpush1.msra.mxu0 0.0
    %583 = vmatprep.subr.mxu0 0.0
    %584 = vmatpush1.msra.mxu0 0.0
    %585 = vmatprep.subr.mxu0 0.0
    %586 = vmatpush1.msra.mxu0 0.0
    %587 = vmatprep.subr.mxu0 0.0
    %588 = vmatpush1.msra.mxu0 0.0
    %589 = vmatprep.subr.mxu0 0.0
    %590 = vmatpush1.msra.mxu0 0.0
    %591 = vmatprep.subr.mxu0 0.0
    %592 = vmatpush1.msra.mxu0 0.0
    %593 = vmatprep.subr.mxu0 0.0
    %594 = vmatpush1.msra.mxu0 %v21
    %595 = vmatprep.subr.mxu0 0.0
    %596 = vmatpush1.msra.mxu0 %v20
    %597 = vmatprep.subr.mxu0 0.0
    %598 = vmatpush1.msra.mxu0 %v19
    %599 = vmatprep.subr.mxu0 0.0
    %600 = vmatpush1.msra.mxu0 %v18
    %601 = vmatprep.subr.mxu0 0.0
    %602 = vmatpush2.msra.mxu0 0.0
    %603 = vmatprep.subr.mxu0 0.0
    %604 = vmatpush2.msra.mxu0 0.0
    %605 = vmatprep.subr.mxu0 0.0
    %606 = vmatpush2.msra.mxu0 0.0
    %607 = vmatprep.subr.mxu0 0.0
    %608 = vmatpush2.msra.mxu0 0.0
    %609 = vmatprep.subr.mxu0 0.0
    %610 = vmatpush2.msra.mxu0 0.0
    %611 = vmatprep.subr.mxu0 0.0
    %612 = vmatpush2.msra.mxu0 0.0
    %613 = vmatprep.subr.mxu0 0.0
    %614 = vmatpush2.msra.mxu0 0.0
    %615 = vmatprep.subr.mxu0 0.0
    %616 = vmatpush2.msra.mxu0 0.0
    %617 = vmatprep.subr.mxu0 0.0
    %618 = vmatpush2.msra.mxu0 0.0
    %619 = vmatprep.subr.mxu0 0.0
    %620 = vmatpush2.msra.mxu0 0.0
    %621 = vmatprep.subr.mxu0 0.0
    %622 = vmatpush2.msra.mxu0 0.0
    %623 = vmatprep.subr.mxu0 0.0
    %624 = vmatpush2.msra.mxu0 0.0
    %625 = vmatprep.subr.mxu0 0.0
    %626 = vmatpush2.msra.mxu0 0.0
    %627 = vmatprep.subr.mxu0 0.0
    %628 = vmatpush2.msra.mxu0 0.0
    %629 = vmatprep.subr.mxu0 0.0
    %630 = vmatpush2.msra.mxu0 0.0
    %631 = vmatprep.subr.mxu0 0.0
    %632 = vmatpush2.msra.mxu0 0.0
    %633 = vmatprep.mubr.f32.mxu0 0.0
    %634 = vmatmul.mubr.f32.gmra.mxu0 %v567
    %v635 = vpop.f32.mrf.mxu0
    %v636 = vadd.f32 0.0, %v635
    %v637 = vpop.f32.mrf.mxu0
    %638 = vdwg.mxu0
    %v639 = vadd.f32 %v565, %v636
    %v640 = vtanh.pop %v639
    %s641 = scalar_lea.vmem %s0, 18
    %v642 = vld [vmem:[%s641] sm:$0x3]
    %v644 = vsel %vm26, %v640, 0
    %646 = vmatprep.subr.mxu0 0.0
    %647 = vmatpush1.msra.mxu0 0.0
    %648 = vmatprep.subr.mxu0 0.0
    %649 = vmatpush1.msra.mxu0 0.0
    %650 = vmatprep.subr.mxu0 0.0
    %651 = vmatpush1.msra.mxu0 0.0
    %652 = vmatprep.subr.mxu0 0.0
    %653 = vmatpush1.msra.mxu0 0.0
    %654 = vmatprep.subr.mxu0 0.0
    %655 = vmatpush1.msra.mxu0 0.0
    %656 = vmatprep.subr.mxu0 0.0
    %657 = vmatpush1.msra.mxu0 0.0
    %658 = vmatprep.subr.mxu0 0.0
    %659 = vmatpush1.msra.mxu0 0.0
    %660 = vmatprep.subr.mxu0 0.0
    %661 = vmatpush1.msra.mxu0 0.0
    %662 = vmatprep.subr.mxu0 0.0
    %663 = vmatpush1.msra.mxu0 0.0
    %664 = vmatprep.subr.mxu0 0.0
    %665 = vmatpush1.msra.mxu0 0.0
    %666 = vmatprep.subr.mxu0 0.0
    %667 = vmatpush1.msra.mxu0 0.0
    %668 = vmatprep.subr.mxu0 0.0
    %669 = vmatpush1.msra.mxu0 0.0
    %670 = vmatprep.subr.mxu0 0.0
    %671 = vmatpush1.msra.mxu0 %v21
    %672 = vmatprep.subr.mxu0 0.0
    %673 = vmatpush1.msra.mxu0 %v20
    %674 = vmatprep.subr.mxu0 0.0
    %675 = vmatpush1.msra.mxu0 %v19
    %676 = vmatprep.subr.mxu0 0.0
    %677 = vmatpush1.msra.mxu0 %v18
    %678 = vmatprep.subr.mxu0 0.0
    %679 = vmatpush2.msra.mxu0 0.0
    %680 = vmatprep.subr.mxu0 0.0
    %681 = vmatpush2.msra.mxu0 0.0
    %682 = vmatprep.subr.mxu0 0.0
    %683 = vmatpush2.msra.mxu0 0.0
    %684 = vmatprep.subr.mxu0 0.0
    %685 = vmatpush2.msra.mxu0 0.0
    %686 = vmatprep.subr.mxu0 0.0
    %687 = vmatpush2.msra.mxu0 0.0
    %688 = vmatprep.subr.mxu0 0.0
    %689 = vmatpush2.msra.mxu0 0.0
    %690 = vmatprep.subr.mxu0 0.0
    %691 = vmatpush2.msra.mxu0 0.0
    %692 = vmatprep.subr.mxu0 0.0
    %693 = vmatpush2.msra.mxu0 0.0
    %694 = vmatprep.subr.mxu0 0.0
    %695 = vmatpush2.msra.mxu0 0.0
    %696 = vmatprep.subr.mxu0 0.0
    %697 = vmatpush2.msra.mxu0 0.0
    %698 = vmatprep.subr.mxu0 0.0
    %699 = vmatpush2.msra.mxu0 0.0
    %700 = vmatprep.subr.mxu0 0.0
    %701 = vmatpush2.msra.mxu0 0.0
    %702 = vmatprep.subr.mxu0 0.0
    %703 = vmatpush2.msra.mxu0 0.0
    %704 = vmatprep.subr.mxu0 0.0
    %705 = vmatpush2.msra.mxu0 0.0
    %706 = vmatprep.subr.mxu0 0.0
    %707 = vmatpush2.msra.mxu0 0.0
    %708 = vmatprep.subr.mxu0 0.0
    %709 = vmatpush2.msra.mxu0 0.0
    %710 = vmatprep.mubr.f32.mxu0 0.0
    %711 = vmatmul.mubr.f32.gmra.mxu0 %v644
    %v712 = vpop.f32.mrf.mxu0
    %v713 = vadd.f32 0.0, %v712
    %v714 = vpop.f32.mrf.mxu0
    %715 = vdwg.mxu0
    %v716 = vadd.f32 %v642, %v713
    %v717 = vtanh.pop %v716
    %s718 = scalar_lea.vmem %s0, 20
    %v719 = vld [vmem:[%s718] sm:$0x3]
    %v721 = vsel %vm26, %v717, 0
    %723 = vmatprep.subr.mxu0 0.0
    %724 = vmatpush1.msra.mxu0 0.0
    %725 = vmatprep.subr.mxu0 0.0
    %726 = vmatpush1.msra.mxu0 0.0
    %727 = vmatprep.subr.mxu0 0.0
    %728 = vmatpush1.msra.mxu0 0.0
    %729 = vmatprep.subr.mxu0 0.0
    %730 = vmatpush1.msra.mxu0 0.0
    %731 = vmatprep.subr.mxu0 0.0
    %732 = vmatpush1.msra.mxu0 0.0
    %733 = vmatprep.subr.mxu0 0.0
    %734 = vmatpush1.msra.mxu0 0.0
    %735 = vmatprep.subr.mxu0 0.0
    %736 = vmatpush1.msra.mxu0 0.0
    %737 = vmatprep.subr.mxu0 0.0
    %738 = vmatpush1.msra.mxu0 0.0
    %739 = vmatprep.subr.mxu0 0.0
    %740 = vmatpush1.msra.mxu0 0.0
    %741 = vmatprep.subr.mxu0 0.0
    %742 = vmatpush1.msra.mxu0 0.0
    %743 = vmatprep.subr.mxu0 0.0
    %744 = vmatpush1.msra.mxu0 0.0
    %745 = vmatprep.subr.mxu0 0.0
    %746 = vmatpush1.msra.mxu0 0.0
    %747 = vmatprep.subr.mxu0 0.0
    %748 = vmatpush1.msra.mxu0 %v21
    %749 = vmatprep.subr.mxu0 0.0
    %750 = vmatpush1.msra.mxu0 %v20
    %751 = vmatprep.subr.mxu0 0.0
    %752 = vmatpush1.msra.mxu0 %v19
    %753 = vmatprep.subr.mxu0 0.0
    %754 = vmatpush1.msra.mxu0 %v18
    %755 = vmatprep.subr.mxu0 0.0
    %756 = vmatpush2.msra.mxu0 0.0
    %757 = vmatprep.subr.mxu0 0.0
    %758 = vmatpush2.msra.mxu0 0.0
    %759 = vmatprep.subr.mxu0 0.0
    %760 = vmatpush2.msra.mxu0 0.0
    %761 = vmatprep.subr.mxu0 0.0
    %762 = vmatpush2.msra.mxu0 0.0
    %763 = vmatprep.subr.mxu0 0.0
    %764 = vmatpush2.msra.mxu0 0.0
    %765 = vmatprep.subr.mxu0 0.0
    %766 = vmatpush2.msra.mxu0 0.0
    %767 = vmatprep.subr.mxu0 0.0
    %768 = vmatpush2.msra.mxu0 0.0
    %769 = vmatprep.subr.mxu0 0.0
    %770 = vmatpush2.msra.mxu0 0.0
    %771 = vmatprep.subr.mxu0 0.0
    %772 = vmatpush2.msra.mxu0 0.0
    %773 = vmatprep.subr.mxu0 0.0
    %774 = vmatpush2.msra.mxu0 0.0
    %775 = vmatprep.subr.mxu0 0.0
    %776 = vmatpush2.msra.mxu0 0.0
    %777 = vmatprep.subr.mxu0 0.0
    %778 = vmatpush2.msra.mxu0 0.0
    %779 = vmatprep.subr.mxu0 0.0
    %780 = vmatpush2.msra.mxu0 0.0
    %781 = vmatprep.subr.mxu0 0.0
    %782 = vmatpush2.msra.mxu0 0.0
    %783 = vmatprep.subr.mxu0 0.0
    %784 = vmatpush2.msra.mxu0 0.0
    %785 = vmatprep.subr.mxu0 0.0
    %786 = vmatpush2.msra.mxu0 0.0
    %787 = vmatprep.mubr.f32.mxu0 0.0
    %788 = vmatmul.mubr.f32.gmra.mxu0 %v721
    %v789 = vpop.f32.mrf.mxu0
    %v790 = vadd.f32 0.0, %v789
    %v791 = vpop.f32.mrf.mxu0
    %792 = vdwg.mxu0
    %v793 = vadd.f32 %v719, %v790
    %v794 = vtanh.pop %v793
    %s795 = scalar_lea.vmem %s0, 22
    %v796 = vld [vmem:[%s795] sm:$0x3]
    %v798 = vsel %vm26, %v794, 0
    %800 = vmatprep.subr.mxu0 0.0
    %801 = vmatpush1.msra.mxu0 0.0
    %802 = vmatprep.subr.mxu0 0.0
    %803 = vmatpush1.msra.mxu0 0.0
    %804 = vmatprep.subr.mxu0 0.0
    %805 = vmatpush1.msra.mxu0 0.0
    %806 = vmatprep.subr.mxu0 0.0
    %807 = vmatpush1.msra.mxu0 0.0
    %808 = vmatprep.subr.mxu0 0.0
    %809 = vmatpush1.msra.mxu0 0.0
    %810 = vmatprep.subr.mxu0 0.0
    %811 = vmatpush1.msra.mxu0 0.0
    %812 = vmatprep.subr.mxu0 0.0
    %813 = vmatpush1.msra.mxu0 0.0
    %814 = vmatprep.subr.mxu0 0.0
    %815 = vmatpush1.msra.mxu0 0.0
    %816 = vmatprep.subr.mxu0 0.0
    %817 = vmatpush1.msra.mxu0 0.0
    %818 = vmatprep.subr.mxu0 0.0
    %819 = vmatpush1.msra.mxu0 0.0
    %820 = vmatprep.subr.mxu0 0.0
    %821 = vmatpush1.msra.mxu0 0.0
    %822 = vmatprep.subr.mxu0 0.0
    %823 = vmatpush1.msra.mxu0 0.0
    %824 = vmatprep.subr.mxu0 0.0
    %825 = vmatpush1.msra.mxu0 %v21
    %826 = vmatprep.subr.mxu0 0.0
    %827 = vmatpush1.msra.mxu0 %v20
    %828 = vmatprep.subr.mxu0 0.0
    %829 = vmatpush1.msra.mxu0 %v19
    %830 = vmatprep.subr.mxu0 0.0
    %831 = vmatpush1.msra.mxu0 %v18
    %832 = vmatprep.subr.mxu0 0.0
    %833 = vmatpush2.msra.mxu0 0.0
    %834 = vmatprep.subr.mxu0 0.0
    %835 = vmatpush2.msra.mxu0 0.0
    %836 = vmatprep.subr.mxu0 0.0
    %837 = vmatpush2.msra.mxu0 0.0
    %838 = vmatprep.subr.mxu0 0.0
    %839 = vmatpush2.msra.mxu0 0.0
    %840 = vmatprep.subr.mxu0 0.0
    %841 = vmatpush2.msra.mxu0 0.0
    %842 = vmatprep.subr.mxu0 0.0
    %843 = vmatpush2.msra.mxu0 0.0
    %844 = vmatprep.subr.mxu0 0.0
    %845 = vmatpush2.msra.mxu0 0.0
    %846 = vmatprep.subr.mxu0 0.0
    %847 = vmatpush2.msra.mxu0 0.0
    %848 = vmatprep.subr.mxu0 0.0
    %849 = vmatpush2.msra.mxu0 0.0
    %850 = vmatprep.subr.mxu0 0.0
    %851 = vmatpush2.msra.mxu0 0.0
    %852 = vmatprep.subr.mxu0 0.0
    %853 = vmatpush2.msra.mxu0 0.0
    %854 = vmatprep.subr.mxu0 0.0
    %855 = vmatpush2.msra.mxu0 0.0
    %856 = vmatprep.subr.mxu0 0.0
    %857 = vmatpush2.msra.mxu0 0.0
    %858 = vmatprep.subr.mxu0 0.0
    %859 = vmatpush2.msra.mxu0 0.0
    %860 = vmatprep.subr.mxu0 0.0
    %861 = vmatpush2.msra.mxu0 0.0
    %862 = vmatprep.subr.mxu0 0.0
    %863 = vmatpush2.msra.mxu0 0.0
    %864 = vmatprep.mubr.f32.mxu0 0.0
    %865 = vmatmul.mubr.f32.gmra.mxu0 %v798
    %v866 = vpop.f32.mrf.mxu0
    %v867 = vadd.f32 0.0, %v866
    %v868 = vpop.f32.mrf.mxu0
    %869 = vdwg.mxu0
    %v870 = vadd.f32 %v796, %v867
    %v871 = vtanh.pop %v870
    %s872 = scalar_lea.vmem %s0, 24
    %v873 = vld [vmem:[%s872] sm:$0x3]
    %v875 = vsel %vm26, %v871, 0
    %877 = vmatprep.subr.mxu0 0.0
    %878 = vmatpush1.msra.mxu0 0.0
    %879 = vmatprep.subr.mxu0 0.0
    %880 = vmatpush1.msra.mxu0 0.0
    %881 = vmatprep.subr.mxu0 0.0
    %882 = vmatpush1.msra.mxu0 0.0
    %883 = vmatprep.subr.mxu0 0.0
    %884 = vmatpush1.msra.mxu0 0.0
    %885 = vmatprep.subr.mxu0 0.0
    %886 = vmatpush1.msra.mxu0 0.0
    %887 = vmatprep.subr.mxu0 0.0
    %888 = vmatpush1.msra.mxu0 0.0
    %889 = vmatprep.subr.mxu0 0.0
    %890 = vmatpush1.msra.mxu0 0.0
    %891 = vmatprep.subr.mxu0 0.0
    %892 = vmatpush1.msra.mxu0 0.0
    %893 = vmatprep.subr.mxu0 0.0
    %894 = vmatpush1.msra.mxu0 0.0
    %895 = vmatprep.subr.mxu0 0.0
    %896 = vmatpush1.msra.mxu0 0.0
    %897 = vmatprep.subr.mxu0 0.0
    %898 = vmatpush1.msra.mxu0 0.0
    %899 = vmatprep.subr.mxu0 0.0
    %900 = vmatpush1.msra.mxu0 0.0
    %901 = vmatprep.subr.mxu0 0.0
    %902 = vmatpush1.msra.mxu0 %v21
    %903 = vmatprep.subr.mxu0 0.0
    %904 = vmatpush1.msra.mxu0 %v20
    %905 = vmatprep.subr.mxu0 0.0
    %906 = vmatpush1.msra.mxu0 %v19
    %907 = vmatprep.subr.mxu0 0.0
    %908 = vmatpush1.msra.mxu0 %v18
    %909 = vmatprep.subr.mxu0 0.0
    %910 = vmatpush2.msra.mxu0 0.0
    %911 = vmatprep.subr.mxu0 0.0
    %912 = vmatpush2.msra.mxu0 0.0
    %913 = vmatprep.subr.mxu0 0.0
    %914 = vmatpush2.msra.mxu0 0.0
    %915 = vmatprep.subr.mxu0 0.0
    %916 = vmatpush2.msra.mxu0 0.0
    %917 = vmatprep.subr.mxu0 0.0
    %918 = vmatpush2.msra.mxu0 0.0
    %919 = vmatprep.subr.mxu0 0.0
    %920 = vmatpush2.msra.mxu0 0.0
    %921 = vmatprep.subr.mxu0 0.0
    %922 = vmatpush2.msra.mxu0 0.0
    %923 = vmatprep.subr.mxu0 0.0
    %924 = vmatpush2.msra.mxu0 0.0
    %925 = vmatprep.subr.mxu0 0.0
    %926 = vmatpush2.msra.mxu0 0.0
    %927 = vmatprep.subr.mxu0 0.0
    %928 = vmatpush2.msra.mxu0 0.0
    %929 = vmatprep.subr.mxu0 0.0
    %930 = vmatpush2.msra.mxu0 0.0
    %931 = vmatprep.subr.mxu0 0.0
    %932 = vmatpush2.msra.mxu0 0.0
    %933 = vmatprep.subr.mxu0 0.0
    %934 = vmatpush2.msra.mxu0 0.0
    %935 = vmatprep.subr.mxu0 0.0
    %936 = vmatpush2.msra.mxu0 0.0
    %937 = vmatprep.subr.mxu0 0.0
    %938 = vmatpush2.msra.mxu0 0.0
    %939 = vmatprep.subr.mxu0 0.0
    %940 = vmatpush2.msra.mxu0 0.0
    %941 = vmatprep.mubr.f32.mxu0 0.0
    %942 = vmatmul.mubr.f32.gmra.mxu0 %v875
    %v943 = vpop.f32.mrf.mxu0
    %v944 = vadd.f32 0.0, %v943
    %v945 = vpop.f32.mrf.mxu0
    %946 = vdwg.mxu0
    %v947 = vadd.f32 %v873, %v944
    %v948 = vtanh.pop %v947
    %s949 = scalar_lea.vmem %s0, 26
    %v950 = vld [vmem:[%s949] sm:$0x3]
    %v952 = vsel %vm26, %v948, 0
    %954 = vmatprep.subr.mxu0 0.0
    %955 = vmatpush1.msra.mxu0 0.0
    %956 = vmatprep.subr.mxu0 0.0
    %957 = vmatpush1.msra.mxu0 0.0
    %958 = vmatprep.subr.mxu0 0.0
    %959 = vmatpush1.msra.mxu0 0.0
    %960 = vmatprep.subr.mxu0 0.0
    %961 = vmatpush1.msra.mxu0 0.0
    %962 = vmatprep.subr.mxu0 0.0
    %963 = vmatpush1.msra.mxu0 0.0
    %964 = vmatprep.subr.mxu0 0.0
    %965 = vmatpush1.msra.mxu0 0.0
    %966 = vmatprep.subr.mxu0 0.0
    %967 = vmatpush1.msra.mxu0 0.0
    %968 = vmatprep.subr.mxu0 0.0
    %969 = vmatpush1.msra.mxu0 0.0
    %970 = vmatprep.subr.mxu0 0.0
    %971 = vmatpush1.msra.mxu0 0.0
    %972 = vmatprep.subr.mxu0 0.0
    %973 = vmatpush1.msra.mxu0 0.0
    %974 = vmatprep.subr.mxu0 0.0
    %975 = vmatpush1.msra.mxu0 0.0
    %976 = vmatprep.subr.mxu0 0.0
    %977 = vmatpush1.msra.mxu0 0.0
    %978 = vmatprep.subr.mxu0 0.0
    %979 = vmatpush1.msra.mxu0 %v21
    %980 = vmatprep.subr.mxu0 0.0
    %981 = vmatpush1.msra.mxu0 %v20
    %982 = vmatprep.subr.mxu0 0.0
    %983 = vmatpush1.msra.mxu0 %v19
    %984 = vmatprep.subr.mxu0 0.0
    %985 = vmatpush1.msra.mxu0 %v18
    %986 = vmatprep.subr.mxu0 0.0
    %987 = vmatpush2.msra.mxu0 0.0
    %988 = vmatprep.subr.mxu0 0.0
    %989 = vmatpush2.msra.mxu0 0.0
    %990 = vmatprep.subr.mxu0 0.0
    %991 = vmatpush2.msra.mxu0 0.0
    %992 = vmatprep.subr.mxu0 0.0
    %993 = vmatpush2.msra.mxu0 0.0
    %994 = vmatprep.subr.mxu0 0.0
    %995 = vmatpush2.msra.mxu0 0.0
    %996 = vmatprep.subr.mxu0 0.0
    %997 = vmatpush2.msra.mxu0 0.0
    %998 = vmatprep.subr.mxu0 0.0
    %999 = vmatpush2.msra.mxu0 0.0
    %1000 = vmatprep.subr.mxu0 0.0
    %1001 = vmatpush2.msra.mxu0 0.0
    %1002 = vmatprep.subr.mxu0 0.0
    %1003 = vmatpush2.msra.mxu0 0.0
    %1004 = vmatprep.subr.mxu0 0.0
    %1005 = vmatpush2.msra.mxu0 0.0
    %1006 = vmatprep.subr.mxu0 0.0
    %1007 = vmatpush2.msra.mxu0 0.0
    %1008 = vmatprep.subr.mxu0 0.0
    %1009 = vmatpush2.msra.mxu0 0.0
    %1010 = vmatprep.subr.mxu0 0.0
    %1011 = vmatpush2.msra.mxu0 0.0
    %1012 = vmatprep.subr.mxu0 0.0
    %1013 = vmatpush2.msra.mxu0 0.0
    %1014 = vmatprep.subr.mxu0 0.0
    %1015 = vmatpush2.msra.mxu0 0.0
    %1016 = vmatprep.subr.mxu0 0.0
    %1017 = vmatpush2.msra.mxu0 0.0
    %1018 = vmatprep.mubr.f32.mxu0 0.0
    %1019 = vmatmul.mubr.f32.gmra.mxu0 %v952
    %v1020 = vpop.f32.mrf.mxu0
    %v1021 = vadd.f32 0.0, %v1020
    %v1022 = vpop.f32.mrf.mxu0
    %1023 = vdwg.mxu0
    %v1024 = vadd.f32 %v950, %v1021
    %v1025 = vtanh.pop %v1024
    %s1026 = scalar_lea.vmem %s0, 28
    %v1027 = vld [vmem:[%s1026] sm:$0x3]
    %v1029 = vsel %vm26, %v1025, 0
    %1031 = vmatprep.subr.mxu0 0.0
    %1032 = vmatpush1.msra.mxu0 0.0
    %1033 = vmatprep.subr.mxu0 0.0
    %1034 = vmatpush1.msra.mxu0 0.0
    %1035 = vmatprep.subr.mxu0 0.0
    %1036 = vmatpush1.msra.mxu0 0.0
    %1037 = vmatprep.subr.mxu0 0.0
    %1038 = vmatpush1.msra.mxu0 0.0
    %1039 = vmatprep.subr.mxu0 0.0
    %1040 = vmatpush1.msra.mxu0 0.0
    %1041 = vmatprep.subr.mxu0 0.0
    %1042 = vmatpush1.msra.mxu0 0.0
    %1043 = vmatprep.subr.mxu0 0.0
    %1044 = vmatpush1.msra.mxu0 0.0
    %1045 = vmatprep.subr.mxu0 0.0
    %1046 = vmatpush1.msra.mxu0 0.0
    %1047 = vmatprep.subr.mxu0 0.0
    %1048 = vmatpush1.msra.mxu0 0.0
    %1049 = vmatprep.subr.mxu0 0.0
    %1050 = vmatpush1.msra.mxu0 0.0
    %1051 = vmatprep.subr.mxu0 0.0
    %1052 = vmatpush1.msra.mxu0 0.0
    %1053 = vmatprep.subr.mxu0 0.0
    %1054 = vmatpush1.msra.mxu0 0.0
    %1055 = vmatprep.subr.mxu0 0.0
    %1056 = vmatpush1.msra.mxu0 %v21
    %1057 = vmatprep.subr.mxu0 0.0
    %1058 = vmatpush1.msra.mxu0 %v20
    %1059 = vmatprep.subr.mxu0 0.0
    %1060 = vmatpush1.msra.mxu0 %v19
    %1061 = vmatprep.subr.mxu0 0.0
    %1062 = vmatpush1.msra.mxu0 %v18
    %1063 = vmatprep.subr.mxu0 0.0
    %1064 = vmatpush2.msra.mxu0 0.0
    %1065 = vmatprep.subr.mxu0 0.0
    %1066 = vmatpush2.msra.mxu0 0.0
    %1067 = vmatprep.subr.mxu0 0.0
    %1068 = vmatpush2.msra.mxu0 0.0
    %1069 = vmatprep.subr.mxu0 0.0
    %1070 = vmatpush2.msra.mxu0 0.0
    %1071 = vmatprep.subr.mxu0 0.0
    %1072 = vmatpush2.msra.mxu0 0.0
    %1073 = vmatprep.subr.mxu0 0.0
    %1074 = vmatpush2.msra.mxu0 0.0
    %1075 = vmatprep.subr.mxu0 0.0
    %1076 = vmatpush2.msra.mxu0 0.0
    %1077 = vmatprep.subr.mxu0 0.0
    %1078 = vmatpush2.msra.mxu0 0.0
    %1079 = vmatprep.subr.mxu0 0.0
    %1080 = vmatpush2.msra.mxu0 0.0
    %1081 = vmatprep.subr.mxu0 0.0
    %1082 = vmatpush2.msra.mxu0 0.0
    %1083 = vmatprep.subr.mxu0 0.0
    %1084 = vmatpush2.msra.mxu0 0.0
    %1085 = vmatprep.subr.mxu0 0.0
    %1086 = vmatpush2.msra.mxu0 0.0
    %1087 = vmatprep.subr.mxu0 0.0
    %1088 = vmatpush2.msra.mxu0 0.0
    %1089 = vmatprep.subr.mxu0 0.0
    %1090 = vmatpush2.msra.mxu0 0.0
    %1091 = vmatprep.subr.mxu0 0.0
    %1092 = vmatpush2.msra.mxu0 0.0
    %1093 = vmatprep.subr.mxu0 0.0
    %1094 = vmatpush2.msra.mxu0 0.0
    %1095 = vmatprep.mubr.f32.mxu0 0.0
    %1096 = vmatmul.mubr.f32.gmra.mxu0 %v1029
    %v1097 = vpop.f32.mrf.mxu0
    %v1098 = vadd.f32 0.0, %v1097
    %v1099 = vpop.f32.mrf.mxu0
    %1100 = vdwg.mxu0
    %v1101 = vadd.f32 %v1027, %v1098
    %v1102 = vtanh.pop %v1101
    %s1103 = scalar_lea.vmem %s0, 30
    %v1104 = vld [vmem:[%s1103] sm:$0x3]
    %v1106 = vsel %vm26, %v1102, 0
    %1108 = vmatprep.subr.mxu0 0.0
    %1109 = vmatpush1.msra.mxu0 0.0
    %1110 = vmatprep.subr.mxu0 0.0
    %1111 = vmatpush1.msra.mxu0 0.0
    %1112 = vmatprep.subr.mxu0 0.0
    %1113 = vmatpush1.msra.mxu0 0.0
    %1114 = vmatprep.subr.mxu0 0.0
    %1115 = vmatpush1.msra.mxu0 0.0
    %1116 = vmatprep.subr.mxu0 0.0
    %1117 = vmatpush1.msra.mxu0 0.0
    %1118 = vmatprep.subr.mxu0 0.0
    %1119 = vmatpush1.msra.mxu0 0.0
    %1120 = vmatprep.subr.mxu0 0.0
    %1121 = vmatpush1.msra.mxu0 0.0
    %1122 = vmatprep.subr.mxu0 0.0
    %1123 = vmatpush1.msra.mxu0 0.0
    %1124 = vmatprep.subr.mxu0 0.0
    %1125 = vmatpush1.msra.mxu0 0.0
    %1126 = vmatprep.subr.mxu0 0.0
    %1127 = vmatpush1.msra.mxu0 0.0
    %1128 = vmatprep.subr.mxu0 0.0
    %1129 = vmatpush1.msra.mxu0 0.0
    %1130 = vmatprep.subr.mxu0 0.0
    %1131 = vmatpush1.msra.mxu0 0.0
    %1132 = vmatprep.subr.mxu0 0.0
    %1133 = vmatpush1.msra.mxu0 %v21
    %1134 = vmatprep.subr.mxu0 0.0
    %1135 = vmatpush1.msra.mxu0 %v20
    %1136 = vmatprep.subr.mxu0 0.0
    %1137 = vmatpush1.msra.mxu0 %v19
    %1138 = vmatprep.subr.mxu0 0.0
    %1139 = vmatpush1.msra.mxu0 %v18
    %1140 = vmatprep.subr.mxu0 0.0
    %1141 = vmatpush2.msra.mxu0 0.0
    %1142 = vmatprep.subr.mxu0 0.0
    %1143 = vmatpush2.msra.mxu0 0.0
    %1144 = vmatprep.subr.mxu0 0.0
    %1145 = vmatpush2.msra.mxu0 0.0
    %1146 = vmatprep.subr.mxu0 0.0
    %1147 = vmatpush2.msra.mxu0 0.0
    %1148 = vmatprep.subr.mxu0 0.0
    %1149 = vmatpush2.msra.mxu0 0.0
    %1150 = vmatprep.subr.mxu0 0.0
    %1151 = vmatpush2.msra.mxu0 0.0
    %1152 = vmatprep.subr.mxu0 0.0
    %1153 = vmatpush2.msra.mxu0 0.0
    %1154 = vmatprep.subr.mxu0 0.0
    %1155 = vmatpush2.msra.mxu0 0.0
    %1156 = vmatprep.subr.mxu0 0.0
    %1157 = vmatpush2.msra.mxu0 0.0
    %1158 = vmatprep.subr.mxu0 0.0
    %1159 = vmatpush2.msra.mxu0 0.0
    %1160 = vmatprep.subr.mxu0 0.0
    %1161 = vmatpush2.msra.mxu0 0.0
    %1162 = vmatprep.subr.mxu0 0.0
    %1163 = vmatpush2.msra.mxu0 0.0
    %1164 = vmatprep.subr.mxu0 0.0
    %1165 = vmatpush2.msra.mxu0 0.0
    %1166 = vmatprep.subr.mxu0 0.0
    %1167 = vmatpush2.msra.mxu0 0.0
    %1168 = vmatprep.subr.mxu0 0.0
    %1169 = vmatpush2.msra.mxu0 0.0
    %1170 = vmatprep.subr.mxu0 0.0
    %1171 = vmatpush2.msra.mxu0 0.0
    %1172 = vmatprep.mubr.f32.mxu0 0.0
    %1173 = vmatmul.mubr.f32.gmra.mxu0 %v1106
    %v1174 = vpop.f32.mrf.mxu0
    %v1175 = vadd.f32 0.0, %v1174
    %v1176 = vpop.f32.mrf.mxu0
    %1177 = vdwg.mxu0
    %v1178 = vadd.f32 %v1104, %v1175
    %v1179 = vtanh.pop %v1178
    %v1180 = vld [vmem:[%s2] sm:$0xff]
    %v1181 = vld [vmem:[%s2 + $0x8] sm:$0xff]
    %v1182 = vld [vmem:[%s2 + $0x10] sm:$0xff]
    %v1183 = vld [vmem:[%s2 + $0x18] sm:$0xff]
    %v1184 = vld [vmem:[%s3] sm:$0x1]
    %v1186 = vlaneseq
    %v1187 = vshrl.u32 %v1186, 7
    %v1188 = vsub.s32 0, %v1187
    %v1189 = vrot.slane %v1184, %v1188
    %v1192 = vsel %vm26, %v1179, 0
    %1194 = vmatprep.subr.mxu0 0.0
    %1195 = vmatpush1.msra.mxu0 0.0
    %1196 = vmatprep.subr.mxu0 0.0
    %1197 = vmatpush1.msra.mxu0 0.0
    %1198 = vmatprep.subr.mxu0 0.0
    %1199 = vmatpush1.msra.mxu0 0.0
    %1200 = vmatprep.subr.mxu0 0.0
    %1201 = vmatpush1.msra.mxu0 0.0
    %1202 = vmatprep.subr.mxu0 0.0
    %1203 = vmatpush1.msra.mxu0 0.0
    %1204 = vmatprep.subr.mxu0 0.0
    %1205 = vmatpush1.msra.mxu0 0.0
    %1206 = vmatprep.subr.mxu0 0.0
    %1207 = vmatpush1.msra.mxu0 0.0
    %1208 = vmatprep.subr.mxu0 0.0
    %1209 = vmatpush1.msra.mxu0 0.0
    %1210 = vmatprep.subr.mxu0 0.0
    %1211 = vmatpush1.msra.mxu0 0.0
    %1212 = vmatprep.subr.mxu0 0.0
    %1213 = vmatpush1.msra.mxu0 0.0
    %1214 = vmatprep.subr.mxu0 0.0
    %1215 = vmatpush1.msra.mxu0 0.0
    %1216 = vmatprep.subr.mxu0 0.0
    %1217 = vmatpush1.msra.mxu0 0.0
    %1218 = vmatprep.subr.mxu0 0.0
    %1219 = vmatpush1.msra.mxu0 %v1183
    %1220 = vmatprep.subr.mxu0 0.0
    %1221 = vmatpush1.msra.mxu0 %v1182
    %1222 = vmatprep.subr.mxu0 0.0
    %1223 = vmatpush1.msra.mxu0 %v1181
    %1224 = vmatprep.subr.mxu0 0.0
    %1225 = vmatpush1.msra.mxu0 %v1180
    %1226 = vmatprep.subr.mxu0 0.0
    %1227 = vmatpush2.msra.mxu0 0.0
    %1228 = vmatprep.subr.mxu0 0.0
    %1229 = vmatpush2.msra.mxu0 0.0
    %1230 = vmatprep.subr.mxu0 0.0
    %1231 = vmatpush2.msra.mxu0 0.0
    %1232 = vmatprep.subr.mxu0 0.0
    %1233 = vmatpush2.msra.mxu0 0.0
    %1234 = vmatprep.subr.mxu0 0.0
    %1235 = vmatpush2.msra.mxu0 0.0
    %1236 = vmatprep.subr.mxu0 0.0
    %1237 = vmatpush2.msra.mxu0 0.0
    %1238 = vmatprep.subr.mxu0 0.0
    %1239 = vmatpush2.msra.mxu0 0.0
    %1240 = vmatprep.subr.mxu0 0.0
    %1241 = vmatpush2.msra.mxu0 0.0
    %1242 = vmatprep.subr.mxu0 0.0
    %1243 = vmatpush2.msra.mxu0 0.0
    %1244 = vmatprep.subr.mxu0 0.0
    %1245 = vmatpush2.msra.mxu0 0.0
    %1246 = vmatprep.subr.mxu0 0.0
    %1247 = vmatpush2.msra.mxu0 0.0
    %1248 = vmatprep.subr.mxu0 0.0
    %1249 = vmatpush2.msra.mxu0 0.0
    %1250 = vmatprep.subr.mxu0 0.0
    %1251 = vmatpush2.msra.mxu0 0.0
    %1252 = vmatprep.subr.mxu0 0.0
    %1253 = vmatpush2.msra.mxu0 0.0
    %1254 = vmatprep.subr.mxu0 0.0
    %1255 = vmatpush2.msra.mxu0 0.0
    %1256 = vmatprep.subr.mxu0 0.0
    %1257 = vmatpush2.msra.mxu0 0.0
    %1258 = vmatprep.mubr.f32.mxu0 0.0
    %1259 = vmatmul.mubr.f32.gmra.mxu0 %v1192
    %v1260 = vpop.f32.mrf.mxu0
    %v1261 = vadd.f32 %v1189, %v1260
    %v1262 = vpop.f32.mrf.mxu0
    %1263 = vdwg.mxu0
    %vm1264 = vcmask 25600
    %1265 = vst.msk [vmem:[#allocation2] sm:$0x3] %vm1264, %v1261
    // Predicated region
    $region18: #{rnn_forward.1} parent=1 // pred_check
      _
    $region19: #{rnn_forward.1} parent=1 // pred_check_branch
      %1267 = sbr.rel (0) target = $region21
    $region20: #{rnn_forward.1} parent=1 // pred_region
      %s1269 = ssub.s32 32, 32
      %1270 = vsyncadd [#allocation3], %s1269
      %s1272 = sshll.u32 [#allocation2], 4
      %s1273 = int_to_ptr.vmem [resolvable:$true] %s1272
      %1275 = dma.vmem_to_hbm [thread:$0]  %s1273, 32, %s4, [#allocation3]
    $region21: #{rnn_forward.1} parent=1 // pred_fallthru
      _
    // Predicated region
    $region22: #{rnn_forward.1} parent=1 // pred_check
      _
    $region23: #{rnn_forward.1} parent=1 // pred_check_branch
      %1277 = sbr.rel (0) target = $region25
    $region24: #{rnn_forward.1} parent=1 // pred_region
      %1278 = dma.done [#allocation3], 32
    $region25: #{rnn_forward.1} parent=1 // pred_fallthru
      _
    %1279 = vsyncpa [#allocation3], 1

</llo_original>
